<compile_context>
chip_gen: v7x
topology: tpu7x:2x2x1
jax: 0.10.0
libtpu: 0.0.40
codegen_flags: <defaults>
</compile_context>

<pallas_src>
import jax
import jax.numpy as jnp
from jax.experimental import pallas as pl
from jax.experimental.pallas import tpu as pltpu

HIDDEN = 300            # logical feature width (matches the PyTorch module)
H_PAD = 384             # 3 * 128 lanes (lane-dense; do NOT pad to 512)
NEG_SLOPE = 0.01        # PyTorch nn.LeakyReLU default
MAX_BATCH_TILE = 2048   # rows per grid step (~18 MiB VMEM double-buffered)


def _cdiv(a, b):
    return -(-a // b)


def _round_up(n, m):
    return _cdiv(n, m) * m


def _leaky_relu(x):
    # mul + max (2 VALU ops) instead of compare + select.
    return jnp.maximum(x, NEG_SLOPE * x)


def mlp_kernel(x_ref, w1_ref, b1_ref, w2_ref, b2_ref, w3_ref, b3_ref, o_ref):
    # Layer 1: Linear(input_dim, 300) + LeakyReLU (bf16 MXU, f32 accumulate).
    # x arrives f32 straight from HBM; the bf16 cast is free against MXU work.
    x = x_ref[...].astype(jnp.bfloat16)
    h = jnp.dot(x, w1_ref[...], preferred_element_type=jnp.float32)
    h = _leaky_relu(h + b1_ref[...])
    # Layer 2: Linear(300, 300) + LeakyReLU   (padded to 384 x 384)
    h = jnp.dot(h.astype(jnp.bfloat16), w2_ref[...],
                preferred_element_type=jnp.float32)
    h = _leaky_relu(h + b2_ref[...])
    # Layer 3: Linear(300, 300), no activation
    h = jnp.dot(h.astype(jnp.bfloat16), w3_ref[...],
                preferred_element_type=jnp.float32)
    o_ref[...] = (h + b3_ref[...]).astype(o_ref.dtype)


def passive_model_forward(x, params, *, slice_output=True):
    """x: (batch, input_dim) float32.

    Returns (batch, HIDDEN) f32 when slice_output=True (module semantics), or
    the padded (batch_pad, H_PAD) f32 kernel output when slice_output=False
    (avoids an extra HBM slice pass; columns >= HIDDEN are exact zeros).
    """
    batch, input_dim = x.shape
    w1, b1 = params["w1"], params["b1"]
    w2, b2 = params["w2"], params["b2"]
    w3, b3 = params["w3"], params["b3"]
    k1 = w1.shape[0]  # input_dim rounded up to a multiple of 8

    # --- batch tiling: spread rows evenly across tiles (<= MAX_BATCH_TILE),
    #     and guarantee >= 2 grid steps so v7x's two TCs both get work.
    b8 = _round_up(max(batch, 1), 8)
    num_tiles = _cdiv(b8, MAX_BATCH_TILE)
    if num_tiles == 1 and b8 >= 16:
        num_tiles = 2
    tb = _round_up(_cdiv(b8, num_tiles), 8)
    b_pad = tb * num_tiles

    pad_rows = b_pad - batch
    pad_cols = k1 - input_dim
    if pad_rows or pad_cols:
        x = jnp.pad(x, ((0, pad_rows), (0, pad_cols)))

    flops = 2 * b_pad * (k1 * H_PAD + 2 * H_PAD * H_PAD)
    bytes_accessed = (b_pad * k1 * 4                    # x (f32)
                      + b_pad * H_PAD * 4               # output (f32)
                      + (k1 + 2 * H_PAD) * H_PAD * 2    # weights (bf16)
                      + 3 * H_PAD * 4)                  # biases (f32)

    const = lambda i: (0, 0)  # weights/biases stay VMEM-resident across grid

    out = pl.pallas_call(
        mlp_kernel,
        out_shape=jax.ShapeDtypeStruct((b_pad, H_PAD), jnp.float32),
        grid=(num_tiles,),
        in_specs=[
            pl.BlockSpec((tb, k1), lambda i: (i, 0)),   # x (batch-tiled, f32)
            pl.BlockSpec((k1, H_PAD), const),           # w1
            pl.BlockSpec((1, H_PAD), const),            # b1
            pl.BlockSpec((H_PAD, H_PAD), const),        # w2
            pl.BlockSpec((1, H_PAD), const),            # b2
            pl.BlockSpec((H_PAD, H_PAD), const),        # w3
            pl.BlockSpec((1, H_PAD), const),            # b3
        ],
        out_specs=pl.BlockSpec((tb, H_PAD), lambda i: (i, 0)),
        compiler_params=pltpu.CompilerParams(
            dimension_semantics=("parallel",),
            vmem_limit_bytes=32 * 1024 * 1024),
        cost_estimate=pl.CostEstimate(
            flops=flops, transcendentals=0, bytes_accessed=bytes_accessed),
    )(x, w1, b1, w2, b2, w3, b3)

    if slice_output:
        return out[:batch, :HIDDEN]
    return out


def init_params(key, input_dim):
    """PyTorch-Linear-like init, stored padded: weights bf16, biases f32.

    Weights are pre-transposed to (in, out) so the kernel does x @ W + b.
    Padded rows/columns are exactly zero, so padding never changes results
    (LeakyReLU(0) = 0 keeps padded lanes at zero through all layers).
    """
    ks = jax.random.split(key, 6)
    k1 = _round_up(input_dim, 8)

    def linear(kw, kb, fan_in, fan_in_pad, fan_out):
        bound = 1.0 / float(fan_in) ** 0.5
        w = jax.random.uniform(kw, (fan_in, fan_out), jnp.float32, -bound, bound)
        b = jax.random.uniform(kb, (1, fan_out), jnp.float32, -bound, bound)
        w_p = jnp.zeros((fan_in_pad, H_PAD), jnp.float32)
        w_p = w_p.at[:fan_in, :fan_out].set(w)
        b_p = jnp.zeros((1, H_PAD), jnp.float32).at[:, :fan_out].set(b)
        return w_p.astype(jnp.bfloat16), b_p

    w1, b1 = linear(ks[0], ks[1], input_dim, k1, HIDDEN)
    w2, b2 = linear(ks[2], ks[3], HIDDEN, H_PAD, HIDDEN)
    w3, b3 = linear(ks[4], ks[5], HIDDEN, H_PAD, HIDDEN)
    return {"w1": w1, "b1": b1, "w2": w2, "b2": b2, "w3": w3, "b3": b3}


def reference_forward(x, params):
    """Pure-JAX reference with identical bf16-input / f32-accumulate numerics."""
    # TODO(synk): bit-faithful f32 matmuls (vs the PyTorch f32 Sequential) are
    # possible but intentionally traded for bf16 MXU throughput here.
    w1, b1 = params["w1"], params["b1"]
    w2, b2 = params["w2"], params["b2"]
    w3, b3 = params["w3"], params["b3"]
    k1 = w1.shape[0]
    xb = jnp.pad(x, ((0, 0), (0, k1 - x.shape[1]))).astype(jnp.bfloat16)
    h = _leaky_relu(jnp.dot(xb, w1, preferred_element_type=jnp.float32) + b1)
    h = _leaky_relu(jnp.dot(h.astype(jnp.bfloat16), w2,
                            preferred_element_type=jnp.float32) + b2)
    h = jnp.dot(h.astype(jnp.bfloat16), w3,
                preferred_element_type=jnp.float32) + b3
    return h[:, :HIDDEN]


if __name__ == "__main__":
    key = jax.random.PRNGKey(0)
    k_x1, k_x2, k_p = jax.random.split(key, 3)

    input_dim = 32
    params = init_params(k_p, input_dim)

    # Case 1: small single-tile batch.
    x1 = jax.random.normal(k_x1, (8, input_dim), jnp.float32)
    out1 = jax.block_until_ready(passive_model_forward(x1, params))
    ref1 = reference_forward(x1, params)
    assert out1.shape == (8, HIDDEN)
    assert jnp.allclose(out1, ref1, atol=1e-2, rtol=1e-2), (
        float(jnp.max(jnp.abs(out1 - ref1))))

    # Case 2: batch that splits into 2 grid steps with row padding.
    x2 = jax.random.normal(k_x2, (24, input_dim), jnp.float32)
    out2 = jax.block_until_ready(passive_model_forward(x2, params))
    ref2 = reference_forward(x2, params)
    assert out2.shape == (24, HIDDEN)
    assert jnp.allclose(out2, ref2, atol=1e-2, rtol=1e-2), (
        float(jnp.max(jnp.abs(out2 - ref2))))

    # Padded-output path (no post-kernel slice): padded lanes are exact zeros.
    out2_pad = jax.block_until_ready(
        passive_model_forward(x2, params, slice_output=False))
    assert out2_pad.shape[1] == H_PAD
    assert jnp.allclose(out2_pad[:24, :HIDDEN], ref2, atol=1e-2, rtol=1e-2)
    assert jnp.all(out2_pad[:, HIDDEN:] == 0.0)

    print("KERNEL_OK")
</pallas_src>

<mosaic_0001>
module attributes {stable_mosaic.version = 11 : i64} {
  func.func @mlp_kernel(%arg0: i32, %arg1: memref<8x32xf32, #tpu.memory_space<vmem>>, %arg2: memref<32x384xbf16, #tpu.memory_space<vmem>>, %arg3: memref<1x384xf32, #tpu.memory_space<vmem>>, %arg4: memref<384x384xbf16, #tpu.memory_space<vmem>>, %arg5: memref<1x384xf32, #tpu.memory_space<vmem>>, %arg6: memref<384x384xbf16, #tpu.memory_space<vmem>>, %arg7: memref<1x384xf32, #tpu.memory_space<vmem>>, %arg8: memref<8x384xf32, #tpu.memory_space<vmem>>) attributes {dimension_semantics = [#tpu.dimension_semantics<parallel>], iteration_bounds = array<i64: 1>, scalar_prefetch = 0 : i64, scratch_operands = 0 : i64, tpu.core_type = #tpu.core_type<tc>, window_params = [{transform_indices = @transform_0, window_bounds = array<i64: 8, 32>}, {pipeline_mode = #tpu.pipeline_mode<synchronous>, transform_indices = @transform_1, window_bounds = array<i64: 32, 384>}, {pipeline_mode = #tpu.pipeline_mode<synchronous>, transform_indices = @transform_2, window_bounds = array<i64: 1, 384>}, {pipeline_mode = #tpu.pipeline_mode<synchronous>, transform_indices = @transform_3, window_bounds = array<i64: 384, 384>}, {pipeline_mode = #tpu.pipeline_mode<synchronous>, transform_indices = @transform_4, window_bounds = array<i64: 1, 384>}, {pipeline_mode = #tpu.pipeline_mode<synchronous>, transform_indices = @transform_5, window_bounds = array<i64: 384, 384>}, {pipeline_mode = #tpu.pipeline_mode<synchronous>, transform_indices = @transform_6, window_bounds = array<i64: 1, 384>}, {transform_indices = @transform_7, window_bounds = array<i64: 8, 384>}]} {
    %c0 = arith.constant 0 : index
    %c0_0 = arith.constant 0 : index
    %0 = vector.load %arg1[%c0, %c0_0] : memref<8x32xf32, #tpu.memory_space<vmem>>, vector<8x32xf32>
    %1 = arith.truncf %0 : vector<8x32xf32> to vector<8x32xbf16>
    %c0_1 = arith.constant 0 : index
    %c0_2 = arith.constant 0 : index
    %2 = vector.load %arg2[%c0_1, %c0_2] : memref<32x384xbf16, #tpu.memory_space<vmem>>, vector<32x384xbf16>
    %cst = arith.constant dense<0.000000e+00> : vector<8x384xf32>
    %3 = tpu.matmul %1, %2, %cst {dimension_numbers = #tpu.dot_dimension_numbers<[1], [0], [0], [1], [0, 0, 1, 1], [], []>} : vector<8x32xbf16>, vector<32x384xbf16>, vector<8x384xf32> -> vector<8x384xf32>
    %c0_3 = arith.constant 0 : index
    %c0_4 = arith.constant 0 : index
    %4 = vector.load %arg3[%c0_3, %c0_4] : memref<1x384xf32, #tpu.memory_space<vmem>>, vector<1x384xf32>
    %5 = vector.broadcast %4 : vector<1x384xf32> to vector<8x384xf32>
    %6 = arith.addf %3, %5 : vector<8x384xf32>
    %cst_5 = arith.constant 0.00999999977 : f32
    %7 = vector.broadcast %cst_5 : f32 to vector<8x384xf32>
    %8 = arith.mulf %7, %6 : vector<8x384xf32>
    %9 = arith.maximumf %6, %8 : vector<8x384xf32>
    %10 = arith.truncf %9 : vector<8x384xf32> to vector<8x384xbf16>
    %c0_6 = arith.constant 0 : index
    %c0_7 = arith.constant 0 : index
    %11 = vector.load %arg4[%c0_6, %c0_7] : memref<384x384xbf16, #tpu.memory_space<vmem>>, vector<384x384xbf16>
    %cst_8 = arith.constant dense<0.000000e+00> : vector<8x384xf32>
    %12 = tpu.matmul %10, %11, %cst_8 {dimension_numbers = #tpu.dot_dimension_numbers<[1], [0], [0], [1], [0, 0, 1, 1], [], []>} : vector<8x384xbf16>, vector<384x384xbf16>, vector<8x384xf32> -> vector<8x384xf32>
    %c0_9 = arith.constant 0 : index
    %c0_10 = arith.constant 0 : index
    %13 = vector.load %arg5[%c0_9, %c0_10] : memref<1x384xf32, #tpu.memory_space<vmem>>, vector<1x384xf32>
    %14 = vector.broadcast %13 : vector<1x384xf32> to vector<8x384xf32>
    %15 = arith.addf %12, %14 : vector<8x384xf32>
    %cst_11 = arith.constant 0.00999999977 : f32
    %16 = vector.broadcast %cst_11 : f32 to vector<8x384xf32>
    %17 = arith.mulf %16, %15 : vector<8x384xf32>
    %18 = arith.maximumf %15, %17 : vector<8x384xf32>
    %19 = arith.truncf %18 : vector<8x384xf32> to vector<8x384xbf16>
    %c0_12 = arith.constant 0 : index
    %c0_13 = arith.constant 0 : index
    %20 = vector.load %arg6[%c0_12, %c0_13] : memref<384x384xbf16, #tpu.memory_space<vmem>>, vector<384x384xbf16>
    %cst_14 = arith.constant dense<0.000000e+00> : vector<8x384xf32>
    %21 = tpu.matmul %19, %20, %cst_14 {dimension_numbers = #tpu.dot_dimension_numbers<[1], [0], [0], [1], [0, 0, 1, 1], [], []>} : vector<8x384xbf16>, vector<384x384xbf16>, vector<8x384xf32> -> vector<8x384xf32>
    %c0_15 = arith.constant 0 : index
    %c0_16 = arith.constant 0 : index
    %22 = vector.load %arg7[%c0_15, %c0_16] : memref<1x384xf32, #tpu.memory_space<vmem>>, vector<1x384xf32>
    %23 = vector.broadcast %22 : vector<1x384xf32> to vector<8x384xf32>
    %24 = arith.addf %21, %23 : vector<8x384xf32>
    %c0_17 = arith.constant 0 : index
    %c0_18 = arith.constant 0 : index
    %25 = vector.load %arg8[%c0_17, %c0_18] : memref<8x384xf32, #tpu.memory_space<vmem>>, vector<8x384xf32>
    tpu.vector_store %arg8[%c0_17, %c0_18], %24 {strides = array<i32>} : memref<8x384xf32, #tpu.memory_space<vmem>>, vector<8x384xf32>,
    return
  }
  func.func @transform_0(%arg0: i32) -> (i32, i32) {
    %c0_i32 = arith.constant 0 : i32
    %c0_i32_0 = arith.constant 0 : i32
    return %arg0, %c0_i32 : i32, i32
  }
  func.func @transform_1(%arg0: i32) -> (i32, i32) {
    %c0_i32 = arith.constant 0 : i32
    %c0_i32_0 = arith.constant 0 : i32
    %c0_i32_1 = arith.constant 0 : i32
    return %c0_i32, %c0_i32_0 : i32, i32
  }
  func.func @transform_2(%arg0: i32) -> (i32, i32) {
    %c0_i32 = arith.constant 0 : i32
    %c0_i32_0 = arith.constant 0 : i32
    %c0_i32_1 = arith.constant 0 : i32
    return %c0_i32, %c0_i32_0 : i32, i32
  }
  func.func @transform_3(%arg0: i32) -> (i32, i32) {
    %c0_i32 = arith.constant 0 : i32
    %c0_i32_0 = arith.constant 0 : i32
    %c0_i32_1 = arith.constant 0 : i32
    return %c0_i32, %c0_i32_0 : i32, i32
  }
  func.func @transform_4(%arg0: i32) -> (i32, i32) {
    %c0_i32 = arith.constant 0 : i32
    %c0_i32_0 = arith.constant 0 : i32
    %c0_i32_1 = arith.constant 0 : i32
    return %c0_i32, %c0_i32_0 : i32, i32
  }
  func.func @transform_5(%arg0: i32) -> (i32, i32) {
    %c0_i32 = arith.constant 0 : i32
    %c0_i32_0 = arith.constant 0 : i32
    %c0_i32_1 = arith.constant 0 : i32
    return %c0_i32, %c0_i32_0 : i32, i32
  }
  func.func @transform_6(%arg0: i32) -> (i32, i32) {
    %c0_i32 = arith.constant 0 : i32
    %c0_i32_0 = arith.constant 0 : i32
    %c0_i32_1 = arith.constant 0 : i32
    return %c0_i32, %c0_i32_0 : i32, i32
  }
  func.func @transform_7(%arg0: i32) -> (i32, i32) {
    %c0_i32 = arith.constant 0 : i32
    %c0_i32_0 = arith.constant 0 : i32
    return %arg0, %c0_i32 : i32, i32
  }
}

</mosaic_0001>

<llo_original>
// kernel: tpu_custom_call.1
$region0: #{tpu_custom_call.1}
  #allocation0 [shape = 'u32[]', space=smem, size = 0x4, offset = 0x4, fixed_abs, tag = 'smem constant byte address 0x4 - core index']
  #allocation1 [shape = 'u32[144,128]{1,0:T(1,128)}', space=vmem, size = 0x12000, scoped, tag = 'internal scratch']
  %s0 = inlined_call_operand.hbm [shape: f32[8,32], index: 0, kind: input, shape index: {}]
  %s1 = inlined_call_operand.hbm [shape: bf16[32,384], index: 1, kind: input, shape index: {}]
  %s2 = inlined_call_operand.vmem [shape: f32[1,384], index: 2, kind: input, shape index: {}]
  %s3 = inlined_call_operand.hbm [shape: bf16[384,384], index: 3, kind: input, shape index: {}]
  %s4 = inlined_call_operand.vmem [shape: f32[1,384], index: 4, kind: input, shape index: {}]
  %s5 = inlined_call_operand.hbm [shape: bf16[384,384], index: 5, kind: input, shape index: {}]
  %s6 = inlined_call_operand.vmem [shape: f32[1,384], index: 6, kind: input, shape index: {}]
  %s7 = inlined_call_operand.hbm [shape: f32[8,384], index: 7, kind: output, shape index: {}]
  %s8 = sld [smem:[#allocation0]]
  $region54: #{tpu_custom_call.1} parent=0
    _
  %s10 = ssub.s32 1, %s8
  %s11 = scalar_select 0, %s10, %s8
  $region1: #{tpu_custom_call.1} parent=0
    #allocation2 [shape = 'u8[4096]{0}', space=vmem, size = 0x1000, scoped, tag = 'input window, operand 0, single buffered']
    #allocation3 [shape = 's32[1]{0}', space=sflag, size = 0x4, scoped, tag = 'scoped memory for tpu_custom_call.1']
    #allocation4 [shape = 's32[1]{0}', space=sflag, size = 0x4, scoped, tag = 'scoped memory for tpu_custom_call.1']
    #allocation5 [shape = 'u8[24576]{0}', space=vmem, size = 0x6000, scoped, tag = 'input window, operand 1, single buffered']
    #allocation6 [shape = 's32[1]{0}', space=sflag, size = 0x4, scoped, tag = 'scoped memory for tpu_custom_call.1']
    #allocation7 [shape = 'u8[294912]{0}', space=vmem, size = 0x48000, scoped, tag = 'input window, operand 3, single buffered']
    #allocation8 [shape = 'u8[294912]{0}', space=vmem, size = 0x48000, scoped, tag = 'input window, operand 5, single buffered']
    #allocation9 [shape = 's32[1]{0}', space=sflag, size = 0x4, scoped, tag = 'scoped memory for tpu_custom_call.1']
    #allocation10 [shape = 'u8[12288]{0}', space=vmem, size = 0x3000, scoped, tag = 'output window, operand 0, single buffered']
    %12 = vsyncpa [#allocation3], 0
    %13 = vsyncpa [#allocation6], 0
    %14 = vsyncpa [#allocation9], 0
    %15 = vsyncpa [#allocation4], 0
    // Predicated region
    $region2: #{tpu_custom_call.1} parent=1 // pred_check
      _
    $region3: #{tpu_custom_call.1} parent=1 // pred_check_branch
      %17 = sbr.rel (0) target = $region5
    $region4: #{tpu_custom_call.1} parent=1 // pred_region
      %s19 = ssub.s32 128, 128
      %20 = vsyncadd [#allocation3], %s19
      %s22 = sshll.u32 [#allocation2], 4
      %s23 = int_to_ptr.vmem [resolvable:$true] %s22
      %25 = dma.hbm_to_vmem [thread:$0]  %s0, 128, %s23, [#allocation3]
    $region5: #{tpu_custom_call.1} parent=1 // pred_fallthru
      _
    // Predicated region
    $region6: #{tpu_custom_call.1} parent=1 // pred_check
      _
    $region7: #{tpu_custom_call.1} parent=1 // pred_check_branch
      %27 = sbr.rel (0) target = $region9
    $region8: #{tpu_custom_call.1} parent=1 // pred_region
      %s29 = ssub.s32 768, 768
      %30 = vsyncadd [#allocation6], %s29
      %s31 = sshll.u32 [#allocation5], 4
      %s32 = int_to_ptr.vmem [resolvable:$true] %s31
      %37 = dma.hbm_to_vmem [thread:$0]  %s1, 768, %s32, [#allocation6], 192, 192, 12
    $region9: #{tpu_custom_call.1} parent=1 // pred_fallthru
      _
    // Predicated region
    $region10: #{tpu_custom_call.1} parent=1 // pred_check
      _
    $region11: #{tpu_custom_call.1} parent=1 // pred_check_branch
      %39 = sbr.rel (0) target = $region13
    $region12: #{tpu_custom_call.1} parent=1 // pred_region
      _
    $region13: #{tpu_custom_call.1} parent=1 // pred_fallthru
      _
    // Predicated region
    $region14: #{tpu_custom_call.1} parent=1 // pred_check
      _
    $region15: #{tpu_custom_call.1} parent=1 // pred_check_branch
      %41 = sbr.rel (0) target = $region17
    $region16: #{tpu_custom_call.1} parent=1 // pred_region
      %s43 = ssub.s32 9216, 9216
      %44 = vsyncadd [#allocation6], %s43
      %s45 = sshll.u32 [#allocation7], 4
      %s46 = int_to_ptr.vmem [resolvable:$true] %s45
      %51 = dma.hbm_to_vmem [thread:$0]  %s3, 9216, %s46, [#allocation6], 192, 192, 12
    $region17: #{tpu_custom_call.1} parent=1 // pred_fallthru
      _
    // Predicated region
    $region18: #{tpu_custom_call.1} parent=1 // pred_check
      _
    $region19: #{tpu_custom_call.1} parent=1 // pred_check_branch
      %53 = sbr.rel (0) target = $region21
    $region20: #{tpu_custom_call.1} parent=1 // pred_region
      _
    $region21: #{tpu_custom_call.1} parent=1 // pred_fallthru
      _
    // Predicated region
    $region22: #{tpu_custom_call.1} parent=1 // pred_check
      _
    $region23: #{tpu_custom_call.1} parent=1 // pred_check_branch
      %55 = sbr.rel (0) target = $region25
    $region24: #{tpu_custom_call.1} parent=1 // pred_region
      %s57 = ssub.s32 9216, 9216
      %58 = vsyncadd [#allocation9], %s57
      %s59 = sshll.u32 [#allocation8], 4
      %s60 = int_to_ptr.vmem [resolvable:$true] %s59
      %65 = dma.hbm_to_vmem [thread:$0]  %s5, 9216, %s60, [#allocation9], 192, 192, 12
    $region25: #{tpu_custom_call.1} parent=1 // pred_fallthru
      _
    // Predicated region
    $region26: #{tpu_custom_call.1} parent=1 // pred_check
      _
    $region27: #{tpu_custom_call.1} parent=1 // pred_check_branch
      %67 = sbr.rel (0) target = $region29
    $region28: #{tpu_custom_call.1} parent=1 // pred_region
      _
    $region29: #{tpu_custom_call.1} parent=1 // pred_fallthru
      _
    // Predicated region
    $region30: #{tpu_custom_call.1} parent=1 // pred_check
      _
    $region31: #{tpu_custom_call.1} parent=1 // pred_check_branch
      %69 = sbr.rel (0) target = $region33
    $region32: #{tpu_custom_call.1} parent=1 // pred_region
      %70 = dma.done [#allocation3], 128
    $region33: #{tpu_custom_call.1} parent=1 // pred_fallthru
      _
    // Predicated region
    $region34: #{tpu_custom_call.1} parent=1 // pred_check
      _
    $region35: #{tpu_custom_call.1} parent=1 // pred_check_branch
      %72 = sbr.rel (0) target = $region37
    $region36: #{tpu_custom_call.1} parent=1 // pred_region
      %73 = dma.done [#allocation6], 768
    $region37: #{tpu_custom_call.1} parent=1 // pred_fallthru
      _
    // Predicated region
    $region38: #{tpu_custom_call.1} parent=1 // pred_check
      _
    $region39: #{tpu_custom_call.1} parent=1 // pred_check_branch
      %75 = sbr.rel (0) target = $region41
    $region40: #{tpu_custom_call.1} parent=1 // pred_region
      %76 = dma.done [#allocation6], 9216
    $region41: #{tpu_custom_call.1} parent=1 // pred_fallthru
      _
    // Predicated region
    $region42: #{tpu_custom_call.1} parent=1 // pred_check
      _
    $region43: #{tpu_custom_call.1} parent=1 // pred_check_branch
      %78 = sbr.rel (0) target = $region45
    $region44: #{tpu_custom_call.1} parent=1 // pred_region
      %79 = dma.done [#allocation9], 9216
    $region45: #{tpu_custom_call.1} parent=1 // pred_fallthru
      _
    %v81 = vld [vmem:[#allocation2] sm:$0xff]
    %v82 = vpack.c.bf16 %v81, %v81
    %v83 = vld [vmem:[#allocation5] sm:$0xff]
    %v84 = vld [vmem:[#allocation5 + $0x8] sm:$0xf]
    %v85 = vld [vmem:[#allocation5 + $0xc] sm:$0xff]
    %v86 = vld [vmem:[#allocation5 + $0x14] sm:$0xf]
    %v87 = vld [vmem:[#allocation5 + $0x18] sm:$0xff]
    %v88 = vld [vmem:[#allocation5 + $0x20] sm:$0xf]
    %v89 = vld [vmem:[#allocation5 + $0x24] sm:$0xff]
    %v90 = vld [vmem:[#allocation5 + $0x2c] sm:$0xf]
    %v91 = vld [vmem:[%s2] sm:$0x7]
    %v93 = vlaneseq
    %v94 = vshrl.u32 %v93, 7
    %v95 = vsub.s32 0, %v94
    %v96 = vrot.slane %v91, %v95
    %v97 = vlaneseq
    %v98 = vshrl.u32 %v97, 7
    %v99 = vsub.s32 1, %v98
    %v100 = vrot.slane %v91, %v99
    %v101 = vlaneseq
    %v102 = vshrl.u32 %v101, 7
    %v103 = vsub.s32 2, %v102
    %v104 = vrot.slane %v91, %v103
    %v116 = vunpack.c.l.b16 %v83
    %v117 = vunpack.c.h.b16 %v83
    %v118 = vunpack.c.l.b16 %v84
    %v119 = vunpack.c.l.b16 %v85
    %v120 = vunpack.c.h.b16 %v85
    %v121 = vunpack.c.l.b16 %v86
    %v122 = vunpack.c.l.b16 %v87
    %v123 = vunpack.c.h.b16 %v87
    %v124 = vunpack.c.l.b16 %v88
    %v125 = vunpack.c.l.b16 %v89
    %v126 = vunpack.c.h.b16 %v89
    %v127 = vunpack.c.l.b16 %v90
    %v128 = vpack.c.b16 %v119, %v116
    %v129 = vpack.c.b16 %v120, %v117
    %v130 = vpack.c.b16 %v121, %v118
    %v131 = vpack.c.b16 %v125, %v122
    %v132 = vpack.c.b16 %v126, %v123
    %v133 = vpack.c.b16 %v127, %v124
    %vm140 = vcmask 261120
    %v142 = vsel %vm140, %v82, 0
    %144 = vmatprep.subr.bf16.mxu0 %v129
    %145 = vmatpush1.bf16.msra.mxu0 %v128
    %146 = vmatprep.subr.bf16.mxu0 %v132
    %147 = vmatpush1.bf16.msra.mxu0 %v131
    %148 = vmatprep.subr.bf16.mxu0 0
    %149 = vmatpush1.bf16.msra.mxu0 0
    %150 = vmatprep.subr.bf16.mxu0 0
    %151 = vmatpush1.bf16.msra.mxu0 0
    %152 = vmatprep.subr.bf16.mxu0 0
    %153 = vmatpush1.bf16.msra.mxu0 0
    %154 = vmatprep.subr.bf16.mxu0 0
    %155 = vmatpush1.bf16.msra.mxu0 0
    %156 = vmatprep.subr.bf16.mxu0 0
    %157 = vmatpush1.bf16.msra.mxu0 0
    %158 = vmatprep.subr.bf16.mxu0 0
    %159 = vmatpush1.bf16.msra.mxu0 0
    %160 = vmatprep.subr.bf16.mxu0 0
    %161 = vmatpush1.bf16.msra.mxu0 0
    %162 = vmatprep.subr.bf16.mxu0 0
    %163 = vmatpush1.bf16.msra.mxu0 0
    %164 = vmatprep.subr.bf16.mxu0 0
    %165 = vmatpush1.bf16.msra.mxu0 0
    %166 = vmatprep.subr.bf16.mxu0 0
    %167 = vmatpush1.bf16.msra.mxu0 0
    %168 = vmatprep.subr.bf16.mxu0 0
    %169 = vmatpush1.bf16.msra.mxu0 0
    %170 = vmatprep.subr.bf16.mxu0 0
    %171 = vmatpush1.bf16.msra.mxu0 0
    %172 = vmatprep.subr.bf16.mxu0 0
    %173 = vmatpush1.bf16.msra.mxu0 0
    %174 = vmatprep.subr.bf16.mxu0 0
    %175 = vmatpush1.bf16.msra.mxu0 0
    %176 = vmatprep.mubr.bf16.mxu0 0
    %177 = vmatmul.mubr.bf16.gmra.mrb[0].mxu0 %v142
    %v178 = vpop.f32.mrb[0].mxu0
    %v179 = vadd.f32 %v96, %v178
    %v180 = vpop.f32.mrb[0].mxu0
    %v181 = vadd.f32 %v100, %v180
    %v182 = vpop.f32.mrb[0].mxu0
    %v183 = vpop.f32.mrb[0].mxu0
    %184 = vdwg.mxu0
    %185 = vmatprep.subr.bf16.mxu0 0
    %186 = vmatpush1.bf16.msra.mxu0 %v130
    %187 = vmatprep.subr.bf16.mxu0 0
    %188 = vmatpush1.bf16.msra.mxu0 %v133
    %189 = vmatprep.subr.bf16.mxu0 0
    %190 = vmatpush1.bf16.msra.mxu0 0
    %191 = vmatprep.subr.bf16.mxu0 0
    %192 = vmatpush1.bf16.msra.mxu0 0
    %193 = vmatprep.subr.bf16.mxu0 0
    %194 = vmatpush1.bf16.msra.mxu0 0
    %195 = vmatprep.subr.bf16.mxu0 0
    %196 = vmatpush1.bf16.msra.mxu0 0
    %197 = vmatprep.subr.bf16.mxu0 0
    %198 = vmatpush1.bf16.msra.mxu0 0
    %199 = vmatprep.subr.bf16.mxu0 0
    %200 = vmatpush1.bf16.msra.mxu0 0
    %201 = vmatprep.subr.bf16.mxu0 0
    %202 = vmatpush1.bf16.msra.mxu0 0
    %203 = vmatprep.subr.bf16.mxu0 0
    %204 = vmatpush1.bf16.msra.mxu0 0
    %205 = vmatprep.subr.bf16.mxu0 0
    %206 = vmatpush1.bf16.msra.mxu0 0
    %207 = vmatprep.subr.bf16.mxu0 0
    %208 = vmatpush1.bf16.msra.mxu0 0
    %209 = vmatprep.subr.bf16.mxu0 0
    %210 = vmatpush1.bf16.msra.mxu0 0
    %211 = vmatprep.subr.bf16.mxu0 0
    %212 = vmatpush1.bf16.msra.mxu0 0
    %213 = vmatprep.subr.bf16.mxu0 0
    %214 = vmatpush1.bf16.msra.mxu0 0
    %215 = vmatprep.subr.bf16.mxu0 0
    %216 = vmatpush1.bf16.msra.mxu0 0
    %217 = vmatprep.mubr.bf16.mxu0 0
    %218 = vmatmul.mubr.bf16.gmra.mrb[0].mxu0 %v142
    %v219 = vpop.f32.mrb[0].mxu0
    %v220 = vadd.f32 %v104, %v219
    %v221 = vpop.f32.mrb[0].mxu0
    %v222 = vpop.f32.mrb[0].mxu0
    %v223 = vpop.f32.mrb[0].mxu0
    %224 = vdwg.mxu0
    %v225 = vmul.f32 %v179, 0.01
    %v226 = vmul.f32 %v181, 0.01
    %v227 = vmul.f32 %v220, 0.01
    %v228 = vmax.f32 %v179, %v225
    %v229 = vmax.f32 %v181, %v226
    %v230 = vmax.f32 %v220, %v227
    %v231 = vpack.c.bf16 %v228, %v228
    %v232 = vpack.c.bf16 %v229, %v229
    %v233 = vpack.c.bf16 %v230, %v230
    %v234 = vld [vmem:[#allocation7] sm:$0xff]
    %v235 = vld [vmem:[#allocation7 + $0x8] sm:$0xf]
    %v236 = vld [vmem:[#allocation7 + $0xc] sm:$0xff]
    %v237 = vld [vmem:[#allocation7 + $0x14] sm:$0xf]
    %v238 = vld [vmem:[#allocation7 + $0x18] sm:$0xff]
    %v239 = vld [vmem:[#allocation7 + $0x20] sm:$0xf]
    %v240 = vld [vmem:[#allocation7 + $0x24] sm:$0xff]
    %v241 = vld [vmem:[#allocation7 + $0x2c] sm:$0xf]
    %v242 = vld [vmem:[#allocation7 + $0x30] sm:$0xff]
    %v243 = vld [vmem:[#allocation7 + $0x38] sm:$0xf]
    %v244 = vld [vmem:[#allocation7 + $0x3c] sm:$0xff]
    %v245 = vld [vmem:[#allocation7 + $0x44] sm:$0xf]
    %v246 = vld [vmem:[#allocation7 + $0x48] sm:$0xff]
    %v247 = vld [vmem:[#allocation7 + $0x50] sm:$0xf]
    %v248 = vld [vmem:[#allocation7 + $0x54] sm:$0xff]
    %v249 = vld [vmem:[#allocation7 + $0x5c] sm:$0xf]
    %v250 = vld [vmem:[#allocation7 + $0x60] sm:$0xff]
    %v251 = vld [vmem:[#allocation7 + $0x68] sm:$0xf]
    %v252 = vld [vmem:[#allocation7 + $0x6c] sm:$0xff]
    %v253 = vld [vmem:[#allocation7 + $0x74] sm:$0xf]
    %v254 = vld [vmem:[#allocation7 + $0x78] sm:$0xff]
    %v255 = vld [vmem:[#allocation7 + $0x80] sm:$0xf]
    %v256 = vld [vmem:[#allocation7 + $0x84] sm:$0xff]
    %v257 = vld [vmem:[#allocation7 + $0x8c] sm:$0xf]
    %v258 = vld [vmem:[#allocation7 + $0x90] sm:$0xff]
    %v259 = vld [vmem:[#allocation7 + $0x98] sm:$0xf]
    %v260 = vld [vmem:[#allocation7 + $0x9c] sm:$0xff]
    %v261 = vld [vmem:[#allocation7 + $0xa4] sm:$0xf]
    %v262 = vld [vmem:[#allocation7 + $0xa8] sm:$0xff]
    %v263 = vld [vmem:[#allocation7 + $0xb0] sm:$0xf]
    %v264 = vld [vmem:[#allocation7 + $0xb4] sm:$0xff]
    %v265 = vld [vmem:[#allocation7 + $0xbc] sm:$0xf]
    %v266 = vld [vmem:[#allocation7 + $0xc0] sm:$0xff]
    %v267 = vld [vmem:[#allocation7 + $0xc8] sm:$0xf]
    %v268 = vld [vmem:[#allocation7 + $0xcc] sm:$0xff]
    %v269 = vld [vmem:[#allocation7 + $0xd4] sm:$0xf]
    %v270 = vld [vmem:[#allocation7 + $0xd8] sm:$0xff]
    %v271 = vld [vmem:[#allocation7 + $0xe0] sm:$0xf]
    %v272 = vld [vmem:[#allocation7 + $0xe4] sm:$0xff]
    %v273 = vld [vmem:[#allocation7 + $0xec] sm:$0xf]
    %v274 = vld [vmem:[#allocation7 + $0xf0] sm:$0xff]
    %v275 = vld [vmem:[#allocation7 + $0xf8] sm:$0xf]
    %v276 = vld [vmem:[#allocation7 + $0xfc] sm:$0xff]
    %v277 = vld [vmem:[#allocation7 + $0x104] sm:$0xf]
    %v278 = vld [vmem:[#allocation7 + $0x108] sm:$0xff]
    %v279 = vld [vmem:[#allocation7 + $0x110] sm:$0xf]
    %v280 = vld [vmem:[#allocation7 + $0x114] sm:$0xff]
    %v281 = vld [vmem:[#allocation7 + $0x11c] sm:$0xf]
    %v282 = vld [vmem:[#allocation7 + $0x120] sm:$0xff]
    %v283 = vld [vmem:[#allocation7 + $0x128] sm:$0xf]
    %v284 = vld [vmem:[#allocation7 + $0x12c] sm:$0xff]
    %v285 = vld [vmem:[#allocation7 + $0x134] sm:$0xf]
    %v286 = vld [vmem:[#allocation7 + $0x138] sm:$0xff]
    %v287 = vld [vmem:[#allocation7 + $0x140] sm:$0xf]
    %v288 = vld [vmem:[#allocation7 + $0x144] sm:$0xff]
    %v289 = vld [vmem:[#allocation7 + $0x14c] sm:$0xf]
    %v290 = vld [vmem:[#allocation7 + $0x150] sm:$0xff]
    %v291 = vld [vmem:[#allocation7 + $0x158] sm:$0xf]
    %v292 = vld [vmem:[#allocation7 + $0x15c] sm:$0xff]
    %v293 = vld [vmem:[#allocation7 + $0x164] sm:$0xf]
    %v294 = vld [vmem:[#allocation7 + $0x168] sm:$0xff]
    %v295 = vld [vmem:[#allocation7 + $0x170] sm:$0xf]
    %v296 = vld [vmem:[#allocation7 + $0x174] sm:$0xff]
    %v297 = vld [vmem:[#allocation7 + $0x17c] sm:$0xf]
    %v298 = vld [vmem:[#allocation7 + $0x180] sm:$0xff]
    %v299 = vld [vmem:[#allocation7 + $0x188] sm:$0xf]
    %v300 = vld [vmem:[#allocation7 + $0x18c] sm:$0xff]
    %v301 = vld [vmem:[#allocation7 + $0x194] sm:$0xf]
    %v302 = vld [vmem:[#allocation7 + $0x198] sm:$0xff]
    %v303 = vld [vmem:[#allocation7 + $0x1a0] sm:$0xf]
    %v304 = vld [vmem:[#allocation7 + $0x1a4] sm:$0xff]
    %v305 = vld [vmem:[#allocation7 + $0x1ac] sm:$0xf]
    %v306 = vld [vmem:[#allocation7 + $0x1b0] sm:$0xff]
    %v307 = vld [vmem:[#allocation7 + $0x1b8] sm:$0xf]
    %v308 = vld [vmem:[#allocation7 + $0x1bc] sm:$0xff]
    %v309 = vld [vmem:[#allocation7 + $0x1c4] sm:$0xf]
    %v310 = vld [vmem:[#allocation7 + $0x1c8] sm:$0xff]
    %v311 = vld [vmem:[#allocation7 + $0x1d0] sm:$0xf]
    %v312 = vld [vmem:[#allocation7 + $0x1d4] sm:$0xff]
    %v313 = vld [vmem:[#allocation7 + $0x1dc] sm:$0xf]
    %v314 = vld [vmem:[#allocation7 + $0x1e0] sm:$0xff]
    %v315 = vld [vmem:[#allocation7 + $0x1e8] sm:$0xf]
    %v316 = vld [vmem:[#allocation7 + $0x1ec] sm:$0xff]
    %v317 = vld [vmem:[#allocation7 + $0x1f4] sm:$0xf]
    %v318 = vld [vmem:[#allocation7 + $0x1f8] sm:$0xff]
    %v319 = vld [vmem:[#allocation7 + $0x200] sm:$0xf]
    %v320 = vld [vmem:[#allocation7 + $0x204] sm:$0xff]
    %v321 = vld [vmem:[#allocation7 + $0x20c] sm:$0xf]
    %v322 = vld [vmem:[#allocation7 + $0x210] sm:$0xff]
    %v323 = vld [vmem:[#allocation7 + $0x218] sm:$0xf]
    %v324 = vld [vmem:[#allocation7 + $0x21c] sm:$0xff]
    %v325 = vld [vmem:[#allocation7 + $0x224] sm:$0xf]
    %v326 = vld [vmem:[#allocation7 + $0x228] sm:$0xff]
    %v327 = vld [vmem:[#allocation7 + $0x230] sm:$0xf]
    %v328 = vld [vmem:[#allocation7 + $0x234] sm:$0xff]
    %v329 = vld [vmem:[#allocation7 + $0x23c] sm:$0xf]
    %v330 = vld [vmem:[%s4] sm:$0x7]
    %v332 = vlaneseq
    %v333 = vshrl.u32 %v332, 7
    %v334 = vsub.s32 0, %v333
    %v335 = vrot.slane %v330, %v334
    %v336 = vlaneseq
    %v337 = vshrl.u32 %v336, 7
    %v338 = vsub.s32 1, %v337
    %v339 = vrot.slane %v330, %v338
    %v340 = vlaneseq
    %v341 = vshrl.u32 %v340, 7
    %v342 = vsub.s32 2, %v341
    %v343 = vrot.slane %v330, %v342
    %v443 = vunpack.c.l.b16 %v234
    %v444 = vunpack.c.h.b16 %v234
    %v445 = vunpack.c.l.b16 %v235
    %v446 = vunpack.c.l.b16 %v236
    %v447 = vunpack.c.h.b16 %v236
    %v448 = vunpack.c.l.b16 %v237
    %v449 = vunpack.c.l.b16 %v238
    %v450 = vunpack.c.h.b16 %v238
    %v451 = vunpack.c.l.b16 %v239
    %v452 = vunpack.c.l.b16 %v240
    %v453 = vunpack.c.h.b16 %v240
    %v454 = vunpack.c.l.b16 %v241
    %v455 = vunpack.c.l.b16 %v242
    %v456 = vunpack.c.h.b16 %v242
    %v457 = vunpack.c.l.b16 %v243
    %v458 = vunpack.c.l.b16 %v244
    %v459 = vunpack.c.h.b16 %v244
    %v460 = vunpack.c.l.b16 %v245
    %v461 = vunpack.c.l.b16 %v246
    %v462 = vunpack.c.h.b16 %v246
    %v463 = vunpack.c.l.b16 %v247
    %v464 = vunpack.c.l.b16 %v248
    %v465 = vunpack.c.h.b16 %v248
    %v466 = vunpack.c.l.b16 %v249
    %v467 = vunpack.c.l.b16 %v250
    %v468 = vunpack.c.h.b16 %v250
    %v469 = vunpack.c.l.b16 %v251
    %v470 = vunpack.c.l.b16 %v252
    %v471 = vunpack.c.h.b16 %v252
    %v472 = vunpack.c.l.b16 %v253
    %v473 = vunpack.c.l.b16 %v254
    %v474 = vunpack.c.h.b16 %v254
    %v475 = vunpack.c.l.b16 %v255
    %v476 = vunpack.c.l.b16 %v256
    %v477 = vunpack.c.h.b16 %v256
    %v478 = vunpack.c.l.b16 %v257
    %v479 = vunpack.c.l.b16 %v258
    %v480 = vunpack.c.h.b16 %v258
    %v481 = vunpack.c.l.b16 %v259
    %v482 = vunpack.c.l.b16 %v260
    %v483 = vunpack.c.h.b16 %v260
    %v484 = vunpack.c.l.b16 %v261
    %v485 = vunpack.c.l.b16 %v262
    %v486 = vunpack.c.h.b16 %v262
    %v487 = vunpack.c.l.b16 %v263
    %v488 = vunpack.c.l.b16 %v264
    %v489 = vunpack.c.h.b16 %v264
    %v490 = vunpack.c.l.b16 %v265
    %v491 = vunpack.c.l.b16 %v266
    %v492 = vunpack.c.h.b16 %v266
    %v493 = vunpack.c.l.b16 %v267
    %v494 = vunpack.c.l.b16 %v268
    %v495 = vunpack.c.h.b16 %v268
    %v496 = vunpack.c.l.b16 %v269
    %v497 = vunpack.c.l.b16 %v270
    %v498 = vunpack.c.h.b16 %v270
    %v499 = vunpack.c.l.b16 %v271
    %v500 = vunpack.c.l.b16 %v272
    %v501 = vunpack.c.h.b16 %v272
    %v502 = vunpack.c.l.b16 %v273
    %v503 = vunpack.c.l.b16 %v274
    %v504 = vunpack.c.h.b16 %v274
    %v505 = vunpack.c.l.b16 %v275
    %v506 = vunpack.c.l.b16 %v276
    %v507 = vunpack.c.h.b16 %v276
    %v508 = vunpack.c.l.b16 %v277
    %v509 = vunpack.c.l.b16 %v278
    %v510 = vunpack.c.h.b16 %v278
    %v511 = vunpack.c.l.b16 %v279
    %v512 = vunpack.c.l.b16 %v280
    %v513 = vunpack.c.h.b16 %v280
    %v514 = vunpack.c.l.b16 %v281
    %v515 = vunpack.c.l.b16 %v282
    %v516 = vunpack.c.h.b16 %v282
    %v517 = vunpack.c.l.b16 %v283
    %v518 = vunpack.c.l.b16 %v284
    %v519 = vunpack.c.h.b16 %v284
    %v520 = vunpack.c.l.b16 %v285
    %v521 = vunpack.c.l.b16 %v286
    %v522 = vunpack.c.h.b16 %v286
    %v523 = vunpack.c.l.b16 %v287
    %v524 = vunpack.c.l.b16 %v288
    %v525 = vunpack.c.h.b16 %v288
    %v526 = vunpack.c.l.b16 %v289
    %v527 = vunpack.c.l.b16 %v290
    %v528 = vunpack.c.h.b16 %v290
    %v529 = vunpack.c.l.b16 %v291
    %v530 = vunpack.c.l.b16 %v292
    %v531 = vunpack.c.h.b16 %v292
    %v532 = vunpack.c.l.b16 %v293
    %v533 = vunpack.c.l.b16 %v294
    %v534 = vunpack.c.h.b16 %v294
    %v535 = vunpack.c.l.b16 %v295
    %v536 = vunpack.c.l.b16 %v296
    %v537 = vunpack.c.h.b16 %v296
    %v538 = vunpack.c.l.b16 %v297
    %v539 = vunpack.c.l.b16 %v298
    %v540 = vunpack.c.h.b16 %v298
    %v541 = vunpack.c.l.b16 %v299
    %v542 = vunpack.c.l.b16 %v300
    %v543 = vunpack.c.h.b16 %v300
    %v544 = vunpack.c.l.b16 %v301
    %v545 = vunpack.c.l.b16 %v302
    %v546 = vunpack.c.h.b16 %v302
    %v547 = vunpack.c.l.b16 %v303
    %v548 = vunpack.c.l.b16 %v304
    %v549 = vunpack.c.h.b16 %v304
    %v550 = vunpack.c.l.b16 %v305
    %v551 = vunpack.c.l.b16 %v306
    %v552 = vunpack.c.h.b16 %v306
    %v553 = vunpack.c.l.b16 %v307
    %v554 = vunpack.c.l.b16 %v308
    %v555 = vunpack.c.h.b16 %v308
    %v556 = vunpack.c.l.b16 %v309
    %v557 = vunpack.c.l.b16 %v310
    %v558 = vunpack.c.h.b16 %v310
    %v559 = vunpack.c.l.b16 %v311
    %v560 = vunpack.c.l.b16 %v312
    %v561 = vunpack.c.h.b16 %v312
    %v562 = vunpack.c.l.b16 %v313
    %v563 = vunpack.c.l.b16 %v314
    %v564 = vunpack.c.h.b16 %v314
    %v565 = vunpack.c.l.b16 %v315
    %v566 = vunpack.c.l.b16 %v316
    %v567 = vunpack.c.h.b16 %v316
    %v568 = vunpack.c.l.b16 %v317
    %v569 = vunpack.c.l.b16 %v318
    %v570 = vunpack.c.h.b16 %v318
    %v571 = vunpack.c.l.b16 %v319
    %v572 = vunpack.c.l.b16 %v320
    %v573 = vunpack.c.h.b16 %v320
    %v574 = vunpack.c.l.b16 %v321
    %v575 = vunpack.c.l.b16 %v322
    %v576 = vunpack.c.h.b16 %v322
    %v577 = vunpack.c.l.b16 %v323
    %v578 = vunpack.c.l.b16 %v324
    %v579 = vunpack.c.h.b16 %v324
    %v580 = vunpack.c.l.b16 %v325
    %v581 = vunpack.c.l.b16 %v326
    %v582 = vunpack.c.h.b16 %v326
    %v583 = vunpack.c.l.b16 %v327
    %v584 = vunpack.c.l.b16 %v328
    %v585 = vunpack.c.h.b16 %v328
    %v586 = vunpack.c.l.b16 %v329
    %v587 = vpack.c.b16 %v446, %v443
    %v588 = vpack.c.b16 %v447, %v444
    %v589 = vpack.c.b16 %v448, %v445
    %v590 = vpack.c.b16 %v452, %v449
    %v591 = vpack.c.b16 %v453, %v450
    %v592 = vpack.c.b16 %v454, %v451
    %v593 = vpack.c.b16 %v458, %v455
    %v594 = vpack.c.b16 %v459, %v456
    %v595 = vpack.c.b16 %v460, %v457
    %v596 = vpack.c.b16 %v464, %v461
    %v597 = vpack.c.b16 %v465, %v462
    %v598 = vpack.c.b16 %v466, %v463
    %v599 = vpack.c.b16 %v470, %v467
    %v600 = vpack.c.b16 %v471, %v468
    %v601 = vpack.c.b16 %v472, %v469
    %v602 = vpack.c.b16 %v476, %v473
    %v603 = vpack.c.b16 %v477, %v474
    %v604 = vpack.c.b16 %v478, %v475
    %v605 = vpack.c.b16 %v482, %v479
    %v606 = vpack.c.b16 %v483, %v480
    %v607 = vpack.c.b16 %v484, %v481
    %v608 = vpack.c.b16 %v488, %v485
    %v609 = vpack.c.b16 %v489, %v486
    %v610 = vpack.c.b16 %v490, %v487
    %v611 = vpack.c.b16 %v494, %v491
    %v612 = vpack.c.b16 %v495, %v492
    %v613 = vpack.c.b16 %v496, %v493
    %v614 = vpack.c.b16 %v500, %v497
    %v615 = vpack.c.b16 %v501, %v498
    %v616 = vpack.c.b16 %v502, %v499
    %v617 = vpack.c.b16 %v506, %v503
    %v618 = vpack.c.b16 %v507, %v504
    %v619 = vpack.c.b16 %v508, %v505
    %v620 = vpack.c.b16 %v512, %v509
    %v621 = vpack.c.b16 %v513, %v510
    %v622 = vpack.c.b16 %v514, %v511
    %v623 = vpack.c.b16 %v518, %v515
    %v624 = vpack.c.b16 %v519, %v516
    %v625 = vpack.c.b16 %v520, %v517
    %v626 = vpack.c.b16 %v524, %v521
    %v627 = vpack.c.b16 %v525, %v522
    %v628 = vpack.c.b16 %v526, %v523
    %v629 = vpack.c.b16 %v530, %v527
    %v630 = vpack.c.b16 %v531, %v528
    %v631 = vpack.c.b16 %v532, %v529
    %v632 = vpack.c.b16 %v536, %v533
    %v633 = vpack.c.b16 %v537, %v534
    %v634 = vpack.c.b16 %v538, %v535
    %v635 = vpack.c.b16 %v542, %v539
    %v636 = vpack.c.b16 %v543, %v540
    %v637 = vpack.c.b16 %v544, %v541
    %v638 = vpack.c.b16 %v548, %v545
    %v639 = vpack.c.b16 %v549, %v546
    %v640 = vpack.c.b16 %v550, %v547
    %v641 = vpack.c.b16 %v554, %v551
    %v642 = vpack.c.b16 %v555, %v552
    %v643 = vpack.c.b16 %v556, %v553
    %v644 = vpack.c.b16 %v560, %v557
    %v645 = vpack.c.b16 %v561, %v558
    %v646 = vpack.c.b16 %v562, %v559
    %v647 = vpack.c.b16 %v566, %v563
    %v648 = vpack.c.b16 %v567, %v564
    %v649 = vpack.c.b16 %v568, %v565
    %v650 = vpack.c.b16 %v572, %v569
    %v651 = vpack.c.b16 %v573, %v570
    %v652 = vpack.c.b16 %v574, %v571
    %v653 = vpack.c.b16 %v578, %v575
    %v654 = vpack.c.b16 %v579, %v576
    %v655 = vpack.c.b16 %v580, %v577
    %v656 = vpack.c.b16 %v584, %v581
    %v657 = vpack.c.b16 %v585, %v582
    %v658 = vpack.c.b16 %v586, %v583
    %731 = vmatprep.subr.bf16.mxu0 %v588
    %732 = vmatpush1.bf16.msra.mxu0 %v587
    %733 = vmatprep.subr.bf16.mxu0 %v591
    %734 = vmatpush1.bf16.msra.mxu0 %v590
    %735 = vmatprep.subr.bf16.mxu0 %v594
    %736 = vmatpush1.bf16.msra.mxu0 %v593
    %737 = vmatprep.subr.bf16.mxu0 %v597
    %738 = vmatpush1.bf16.msra.mxu0 %v596
    %739 = vmatprep.subr.bf16.mxu0 %v600
    %740 = vmatpush1.bf16.msra.mxu0 %v599
    %741 = vmatprep.subr.bf16.mxu0 %v603
    %742 = vmatpush1.bf16.msra.mxu0 %v602
    %743 = vmatprep.subr.bf16.mxu0 %v606
    %744 = vmatpush1.bf16.msra.mxu0 %v605
    %745 = vmatprep.subr.bf16.mxu0 %v609
    %746 = vmatpush1.bf16.msra.mxu0 %v608
    %747 = vmatprep.subr.bf16.mxu0 %v612
    %748 = vmatpush1.bf16.msra.mxu0 %v611
    %749 = vmatprep.subr.bf16.mxu0 %v615
    %750 = vmatpush1.bf16.msra.mxu0 %v614
    %751 = vmatprep.subr.bf16.mxu0 %v618
    %752 = vmatpush1.bf16.msra.mxu0 %v617
    %753 = vmatprep.subr.bf16.mxu0 %v621
    %754 = vmatpush1.bf16.msra.mxu0 %v620
    %755 = vmatprep.subr.bf16.mxu0 %v624
    %756 = vmatpush1.bf16.msra.mxu0 %v623
    %757 = vmatprep.subr.bf16.mxu0 %v627
    %758 = vmatpush1.bf16.msra.mxu0 %v626
    %759 = vmatprep.subr.bf16.mxu0 %v630
    %760 = vmatpush1.bf16.msra.mxu0 %v629
    %761 = vmatprep.subr.bf16.mxu0 %v633
    %762 = vmatpush1.bf16.msra.mxu0 %v632
    %763 = vmatprep.mubr.bf16.mxu0 %v232
    %764 = vmatmul.mubr.bf16.gmra.mrb[0].mxu0 %v231
    %v765 = vpop.f32.mrb[0].mxu0
    %v766 = vadd.f32 %v335, %v765
    %v767 = vpop.f32.mrb[0].mxu0
    %v768 = vadd.f32 %v339, %v767
    %v769 = vpop.f32.mrb[0].mxu0
    %v770 = vpop.f32.mrb[0].mxu0
    %771 = vdwg.mxu0
    %772 = vmatprep.subr.bf16.mxu0 %v636
    %773 = vmatpush1.bf16.msra.mxu0 %v635
    %774 = vmatprep.subr.bf16.mxu0 %v639
    %775 = vmatpush1.bf16.msra.mxu0 %v638
    %776 = vmatprep.subr.bf16.mxu0 %v642
    %777 = vmatpush1.bf16.msra.mxu0 %v641
    %778 = vmatprep.subr.bf16.mxu0 %v645
    %779 = vmatpush1.bf16.msra.mxu0 %v644
    %780 = vmatprep.subr.bf16.mxu0 %v648
    %781 = vmatpush1.bf16.msra.mxu0 %v647
    %782 = vmatprep.subr.bf16.mxu0 %v651
    %783 = vmatpush1.bf16.msra.mxu0 %v650
    %784 = vmatprep.subr.bf16.mxu0 %v654
    %785 = vmatpush1.bf16.msra.mxu0 %v653
    %786 = vmatprep.subr.bf16.mxu0 %v657
    %787 = vmatpush1.bf16.msra.mxu0 %v656
    %788 = vmatprep.subr.bf16.mxu0 0
    %789 = vmatpush1.bf16.msra.mxu0 0
    %790 = vmatprep.subr.bf16.mxu0 0
    %791 = vmatpush1.bf16.msra.mxu0 0
    %792 = vmatprep.subr.bf16.mxu0 0
    %793 = vmatpush1.bf16.msra.mxu0 0
    %794 = vmatprep.subr.bf16.mxu0 0
    %795 = vmatpush1.bf16.msra.mxu0 0
    %796 = vmatprep.subr.bf16.mxu0 0
    %797 = vmatpush1.bf16.msra.mxu0 0
    %798 = vmatprep.subr.bf16.mxu0 0
    %799 = vmatpush1.bf16.msra.mxu0 0
    %800 = vmatprep.subr.bf16.mxu0 0
    %801 = vmatpush1.bf16.msra.mxu0 0
    %802 = vmatprep.subr.bf16.mxu0 0
    %803 = vmatpush1.bf16.msra.mxu0 0
    %804 = vmatprep.mubr.bf16.mxu0 0
    %805 = vmatmul.mubr.bf16.gmra.mrb[0].mxu0 %v233
    %v806 = vpop.f32.mrb[0].mxu0
    %v807 = vadd.f32 %v766, %v806
    %v808 = vpop.f32.mrb[0].mxu0
    %v809 = vadd.f32 %v768, %v808
    %v810 = vpop.f32.mrb[0].mxu0
    %v811 = vpop.f32.mrb[0].mxu0
    %812 = vdwg.mxu0
    %813 = vmatprep.subr.bf16.mxu0 0
    %814 = vmatpush1.bf16.msra.mxu0 %v589
    %815 = vmatprep.subr.bf16.mxu0 0
    %816 = vmatpush1.bf16.msra.mxu0 %v592
    %817 = vmatprep.subr.bf16.mxu0 0
    %818 = vmatpush1.bf16.msra.mxu0 %v595
    %819 = vmatprep.subr.bf16.mxu0 0
    %820 = vmatpush1.bf16.msra.mxu0 %v598
    %821 = vmatprep.subr.bf16.mxu0 0
    %822 = vmatpush1.bf16.msra.mxu0 %v601
    %823 = vmatprep.subr.bf16.mxu0 0
    %824 = vmatpush1.bf16.msra.mxu0 %v604
    %825 = vmatprep.subr.bf16.mxu0 0
    %826 = vmatpush1.bf16.msra.mxu0 %v607
    %827 = vmatprep.subr.bf16.mxu0 0
    %828 = vmatpush1.bf16.msra.mxu0 %v610
    %829 = vmatprep.subr.bf16.mxu0 0
    %830 = vmatpush1.bf16.msra.mxu0 %v613
    %831 = vmatprep.subr.bf16.mxu0 0
    %832 = vmatpush1.bf16.msra.mxu0 %v616
    %833 = vmatprep.subr.bf16.mxu0 0
    %834 = vmatpush1.bf16.msra.mxu0 %v619
    %835 = vmatprep.subr.bf16.mxu0 0
    %836 = vmatpush1.bf16.msra.mxu0 %v622
    %837 = vmatprep.subr.bf16.mxu0 0
    %838 = vmatpush1.bf16.msra.mxu0 %v625
    %839 = vmatprep.subr.bf16.mxu0 0
    %840 = vmatpush1.bf16.msra.mxu0 %v628
    %841 = vmatprep.subr.bf16.mxu0 0
    %842 = vmatpush1.bf16.msra.mxu0 %v631
    %843 = vmatprep.subr.bf16.mxu0 0
    %844 = vmatpush1.bf16.msra.mxu0 %v634
    %845 = vmatprep.mubr.bf16.mxu0 %v232
    %846 = vmatmul.mubr.bf16.gmra.mrb[0].mxu0 %v231
    %v847 = vpop.f32.mrb[0].mxu0
    %v848 = vadd.f32 %v343, %v847
    %v849 = vpop.f32.mrb[0].mxu0
    %v850 = vpop.f32.mrb[0].mxu0
    %v851 = vpop.f32.mrb[0].mxu0
    %852 = vdwg.mxu0
    %853 = vmatprep.subr.bf16.mxu0 0
    %854 = vmatpush1.bf16.msra.mxu0 %v637
    %855 = vmatprep.subr.bf16.mxu0 0
    %856 = vmatpush1.bf16.msra.mxu0 %v640
    %857 = vmatprep.subr.bf16.mxu0 0
    %858 = vmatpush1.bf16.msra.mxu0 %v643
    %859 = vmatprep.subr.bf16.mxu0 0
    %860 = vmatpush1.bf16.msra.mxu0 %v646
    %861 = vmatprep.subr.bf16.mxu0 0
    %862 = vmatpush1.bf16.msra.mxu0 %v649
    %863 = vmatprep.subr.bf16.mxu0 0
    %864 = vmatpush1.bf16.msra.mxu0 %v652
    %865 = vmatprep.subr.bf16.mxu0 0
    %866 = vmatpush1.bf16.msra.mxu0 %v655
    %867 = vmatprep.subr.bf16.mxu0 0
    %868 = vmatpush1.bf16.msra.mxu0 %v658
    %869 = vmatprep.subr.bf16.mxu0 0
    %870 = vmatpush1.bf16.msra.mxu0 0
    %871 = vmatprep.subr.bf16.mxu0 0
    %872 = vmatpush1.bf16.msra.mxu0 0
    %873 = vmatprep.subr.bf16.mxu0 0
    %874 = vmatpush1.bf16.msra.mxu0 0
    %875 = vmatprep.subr.bf16.mxu0 0
    %876 = vmatpush1.bf16.msra.mxu0 0
    %877 = vmatprep.subr.bf16.mxu0 0
    %878 = vmatpush1.bf16.msra.mxu0 0
    %879 = vmatprep.subr.bf16.mxu0 0
    %880 = vmatpush1.bf16.msra.mxu0 0
    %881 = vmatprep.subr.bf16.mxu0 0
    %882 = vmatpush1.bf16.msra.mxu0 0
    %883 = vmatprep.subr.bf16.mxu0 0
    %884 = vmatpush1.bf16.msra.mxu0 0
    %885 = vmatprep.mubr.bf16.mxu0 0
    %886 = vmatmul.mubr.bf16.gmra.mrb[0].mxu0 %v233
    %v887 = vpop.f32.mrb[0].mxu0
    %v888 = vadd.f32 %v848, %v887
    %v889 = vpop.f32.mrb[0].mxu0
    %v890 = vpop.f32.mrb[0].mxu0
    %v891 = vpop.f32.mrb[0].mxu0
    %892 = vdwg.mxu0
    %v893 = vmul.f32 %v807, 0.01
    %v894 = vmul.f32 %v809, 0.01
    %v895 = vmul.f32 %v888, 0.01
    %v896 = vmax.f32 %v807, %v893
    %v897 = vmax.f32 %v809, %v894
    %v898 = vmax.f32 %v888, %v895
    %v899 = vpack.c.bf16 %v896, %v896
    %v900 = vpack.c.bf16 %v897, %v897
    %v901 = vpack.c.bf16 %v898, %v898
    %v902 = vld [vmem:[#allocation8] sm:$0xff]
    %v903 = vld [vmem:[#allocation8 + $0x8] sm:$0xf]
    %v904 = vld [vmem:[#allocation8 + $0xc] sm:$0xff]
    %v905 = vld [vmem:[#allocation8 + $0x14] sm:$0xf]
    %v906 = vld [vmem:[#allocation8 + $0x18] sm:$0xff]
    %v907 = vld [vmem:[#allocation8 + $0x20] sm:$0xf]
    %v908 = vld [vmem:[#allocation8 + $0x24] sm:$0xff]
    %v909 = vld [vmem:[#allocation8 + $0x2c] sm:$0xf]
    %v910 = vld [vmem:[#allocation8 + $0x30] sm:$0xff]
    %v911 = vld [vmem:[#allocation8 + $0x38] sm:$0xf]
    %v912 = vld [vmem:[#allocation8 + $0x3c] sm:$0xff]
    %v913 = vld [vmem:[#allocation8 + $0x44] sm:$0xf]
    %v914 = vld [vmem:[#allocation8 + $0x48] sm:$0xff]
    %v915 = vld [vmem:[#allocation8 + $0x50] sm:$0xf]
    %v916 = vld [vmem:[#allocation8 + $0x54] sm:$0xff]
    %v917 = vld [vmem:[#allocation8 + $0x5c] sm:$0xf]
    %v918 = vld [vmem:[#allocation8 + $0x60] sm:$0xff]
    %v919 = vld [vmem:[#allocation8 + $0x68] sm:$0xf]
    %v920 = vld [vmem:[#allocation8 + $0x6c] sm:$0xff]
    %v921 = vld [vmem:[#allocation8 + $0x74] sm:$0xf]
    %v922 = vld [vmem:[#allocation8 + $0x78] sm:$0xff]
    %v923 = vld [vmem:[#allocation8 + $0x80] sm:$0xf]
    %v924 = vld [vmem:[#allocation8 + $0x84] sm:$0xff]
    %v925 = vld [vmem:[#allocation8 + $0x8c] sm:$0xf]
    %v926 = vld [vmem:[#allocation8 + $0x90] sm:$0xff]
    %v927 = vld [vmem:[#allocation8 + $0x98] sm:$0xf]
    %v928 = vld [vmem:[#allocation8 + $0x9c] sm:$0xff]
    %v929 = vld [vmem:[#allocation8 + $0xa4] sm:$0xf]
    %v930 = vld [vmem:[#allocation8 + $0xa8] sm:$0xff]
    %v931 = vld [vmem:[#allocation8 + $0xb0] sm:$0xf]
    %v932 = vld [vmem:[#allocation8 + $0xb4] sm:$0xff]
    %v933 = vld [vmem:[#allocation8 + $0xbc] sm:$0xf]
    %v934 = vld [vmem:[#allocation8 + $0xc0] sm:$0xff]
    %v935 = vld [vmem:[#allocation8 + $0xc8] sm:$0xf]
    %v936 = vld [vmem:[#allocation8 + $0xcc] sm:$0xff]
    %v937 = vld [vmem:[#allocation8 + $0xd4] sm:$0xf]
    %v938 = vld [vmem:[#allocation8 + $0xd8] sm:$0xff]
    %v939 = vld [vmem:[#allocation8 + $0xe0] sm:$0xf]
    %v940 = vld [vmem:[#allocation8 + $0xe4] sm:$0xff]
    %v941 = vld [vmem:[#allocation8 + $0xec] sm:$0xf]
    %v942 = vld [vmem:[#allocation8 + $0xf0] sm:$0xff]
    %v943 = vld [vmem:[#allocation8 + $0xf8] sm:$0xf]
    %v944 = vld [vmem:[#allocation8 + $0xfc] sm:$0xff]
    %v945 = vld [vmem:[#allocation8 + $0x104] sm:$0xf]
    %v946 = vld [vmem:[#allocation8 + $0x108] sm:$0xff]
    %v947 = vld [vmem:[#allocation8 + $0x110] sm:$0xf]
    %v948 = vld [vmem:[#allocation8 + $0x114] sm:$0xff]
    %v949 = vld [vmem:[#allocation8 + $0x11c] sm:$0xf]
    %v950 = vld [vmem:[#allocation8 + $0x120] sm:$0xff]
    %v951 = vld [vmem:[#allocation8 + $0x128] sm:$0xf]
    %v952 = vld [vmem:[#allocation8 + $0x12c] sm:$0xff]
    %v953 = vld [vmem:[#allocation8 + $0x134] sm:$0xf]
    %v954 = vld [vmem:[#allocation8 + $0x138] sm:$0xff]
    %v955 = vld [vmem:[#allocation8 + $0x140] sm:$0xf]
    %v956 = vld [vmem:[#allocation8 + $0x144] sm:$0xff]
    %v957 = vld [vmem:[#allocation8 + $0x14c] sm:$0xf]
    %v958 = vld [vmem:[#allocation8 + $0x150] sm:$0xff]
    %v959 = vld [vmem:[#allocation8 + $0x158] sm:$0xf]
    %v960 = vld [vmem:[#allocation8 + $0x15c] sm:$0xff]
    %v961 = vld [vmem:[#allocation8 + $0x164] sm:$0xf]
    %v962 = vld [vmem:[#allocation8 + $0x168] sm:$0xff]
    %v963 = vld [vmem:[#allocation8 + $0x170] sm:$0xf]
    %v964 = vld [vmem:[#allocation8 + $0x174] sm:$0xff]
    %v965 = vld [vmem:[#allocation8 + $0x17c] sm:$0xf]
    %v966 = vld [vmem:[#allocation8 + $0x180] sm:$0xff]
    %v967 = vld [vmem:[#allocation8 + $0x188] sm:$0xf]
    %v968 = vld [vmem:[#allocation8 + $0x18c] sm:$0xff]
    %v969 = vld [vmem:[#allocation8 + $0x194] sm:$0xf]
    %v970 = vld [vmem:[#allocation8 + $0x198] sm:$0xff]
    %v971 = vld [vmem:[#allocation8 + $0x1a0] sm:$0xf]
    %v972 = vld [vmem:[#allocation8 + $0x1a4] sm:$0xff]
    %v973 = vld [vmem:[#allocation8 + $0x1ac] sm:$0xf]
    %v974 = vld [vmem:[#allocation8 + $0x1b0] sm:$0xff]
    %v975 = vld [vmem:[#allocation8 + $0x1b8] sm:$0xf]
    %v976 = vld [vmem:[#allocation8 + $0x1bc] sm:$0xff]
    %v977 = vld [vmem:[#allocation8 + $0x1c4] sm:$0xf]
    %v978 = vld [vmem:[#allocation8 + $0x1c8] sm:$0xff]
    %v979 = vld [vmem:[#allocation8 + $0x1d0] sm:$0xf]
    %v980 = vld [vmem:[#allocation8 + $0x1d4] sm:$0xff]
    %v981 = vld [vmem:[#allocation8 + $0x1dc] sm:$0xf]
    %v982 = vld [vmem:[#allocation8 + $0x1e0] sm:$0xff]
    %v983 = vld [vmem:[#allocation8 + $0x1e8] sm:$0xf]
    %v984 = vld [vmem:[#allocation8 + $0x1ec] sm:$0xff]
    %v985 = vld [vmem:[#allocation8 + $0x1f4] sm:$0xf]
    %v986 = vld [vmem:[#allocation8 + $0x1f8] sm:$0xff]
    %v987 = vld [vmem:[#allocation8 + $0x200] sm:$0xf]
    %v988 = vld [vmem:[#allocation8 + $0x204] sm:$0xff]
    %v989 = vld [vmem:[#allocation8 + $0x20c] sm:$0xf]
    %v990 = vld [vmem:[#allocation8 + $0x210] sm:$0xff]
    %v991 = vld [vmem:[#allocation8 + $0x218] sm:$0xf]
    %v992 = vld [vmem:[#allocation8 + $0x21c] sm:$0xff]
    %v993 = vld [vmem:[#allocation8 + $0x224] sm:$0xf]
    %v994 = vld [vmem:[#allocation8 + $0x228] sm:$0xff]
    %v995 = vld [vmem:[#allocation8 + $0x230] sm:$0xf]
    %v996 = vld [vmem:[#allocation8 + $0x234] sm:$0xff]
    %v997 = vld [vmem:[#allocation8 + $0x23c] sm:$0xf]
    %v998 = vld [vmem:[%s6] sm:$0x7]
    %v1000 = vlaneseq
    %v1001 = vshrl.u32 %v1000, 7
    %v1002 = vsub.s32 0, %v1001
    %v1003 = vrot.slane %v998, %v1002
    %v1004 = vlaneseq
    %v1005 = vshrl.u32 %v1004, 7
    %v1006 = vsub.s32 1, %v1005
    %v1007 = vrot.slane %v998, %v1006
    %v1008 = vlaneseq
    %v1009 = vshrl.u32 %v1008, 7
    %v1010 = vsub.s32 2, %v1009
    %v1011 = vrot.slane %v998, %v1010
    %v1111 = vunpack.c.l.b16 %v902
    %v1112 = vunpack.c.h.b16 %v902
    %v1113 = vunpack.c.l.b16 %v903
    %v1114 = vunpack.c.l.b16 %v904
    %v1115 = vunpack.c.h.b16 %v904
    %v1116 = vunpack.c.l.b16 %v905
    %v1117 = vunpack.c.l.b16 %v906
    %v1118 = vunpack.c.h.b16 %v906
    %v1119 = vunpack.c.l.b16 %v907
    %v1120 = vunpack.c.l.b16 %v908
    %v1121 = vunpack.c.h.b16 %v908
    %v1122 = vunpack.c.l.b16 %v909
    %v1123 = vunpack.c.l.b16 %v910
    %v1124 = vunpack.c.h.b16 %v910
    %v1125 = vunpack.c.l.b16 %v911
    %v1126 = vunpack.c.l.b16 %v912
    %v1127 = vunpack.c.h.b16 %v912
    %v1128 = vunpack.c.l.b16 %v913
    %v1129 = vunpack.c.l.b16 %v914
    %v1130 = vunpack.c.h.b16 %v914
    %v1131 = vunpack.c.l.b16 %v915
    %v1132 = vunpack.c.l.b16 %v916
    %v1133 = vunpack.c.h.b16 %v916
    %v1134 = vunpack.c.l.b16 %v917
    %v1135 = vunpack.c.l.b16 %v918
    %v1136 = vunpack.c.h.b16 %v918
    %v1137 = vunpack.c.l.b16 %v919
    %v1138 = vunpack.c.l.b16 %v920
    %v1139 = vunpack.c.h.b16 %v920
    %v1140 = vunpack.c.l.b16 %v921
    %v1141 = vunpack.c.l.b16 %v922
    %v1142 = vunpack.c.h.b16 %v922
    %v1143 = vunpack.c.l.b16 %v923
    %v1144 = vunpack.c.l.b16 %v924
    %v1145 = vunpack.c.h.b16 %v924
    %v1146 = vunpack.c.l.b16 %v925
    %v1147 = vunpack.c.l.b16 %v926
    %v1148 = vunpack.c.h.b16 %v926
    %v1149 = vunpack.c.l.b16 %v927
    %v1150 = vunpack.c.l.b16 %v928
    %v1151 = vunpack.c.h.b16 %v928
    %v1152 = vunpack.c.l.b16 %v929
    %v1153 = vunpack.c.l.b16 %v930
    %v1154 = vunpack.c.h.b16 %v930
    %v1155 = vunpack.c.l.b16 %v931
    %v1156 = vunpack.c.l.b16 %v932
    %v1157 = vunpack.c.h.b16 %v932
    %v1158 = vunpack.c.l.b16 %v933
    %v1159 = vunpack.c.l.b16 %v934
    %v1160 = vunpack.c.h.b16 %v934
    %v1161 = vunpack.c.l.b16 %v935
    %v1162 = vunpack.c.l.b16 %v936
    %v1163 = vunpack.c.h.b16 %v936
    %v1164 = vunpack.c.l.b16 %v937
    %v1165 = vunpack.c.l.b16 %v938
    %v1166 = vunpack.c.h.b16 %v938
    %v1167 = vunpack.c.l.b16 %v939
    %v1168 = vunpack.c.l.b16 %v940
    %v1169 = vunpack.c.h.b16 %v940
    %v1170 = vunpack.c.l.b16 %v941
    %v1171 = vunpack.c.l.b16 %v942
    %v1172 = vunpack.c.h.b16 %v942
    %v1173 = vunpack.c.l.b16 %v943
    %v1174 = vunpack.c.l.b16 %v944
    %v1175 = vunpack.c.h.b16 %v944
    %v1176 = vunpack.c.l.b16 %v945
    %v1177 = vunpack.c.l.b16 %v946
    %v1178 = vunpack.c.h.b16 %v946
    %v1179 = vunpack.c.l.b16 %v947
    %v1180 = vunpack.c.l.b16 %v948
    %v1181 = vunpack.c.h.b16 %v948
    %v1182 = vunpack.c.l.b16 %v949
    %v1183 = vunpack.c.l.b16 %v950
    %v1184 = vunpack.c.h.b16 %v950
    %v1185 = vunpack.c.l.b16 %v951
    %v1186 = vunpack.c.l.b16 %v952
    %v1187 = vunpack.c.h.b16 %v952
    %v1188 = vunpack.c.l.b16 %v953
    %v1189 = vunpack.c.l.b16 %v954
    %v1190 = vunpack.c.h.b16 %v954
    %v1191 = vunpack.c.l.b16 %v955
    %v1192 = vunpack.c.l.b16 %v956
    %v1193 = vunpack.c.h.b16 %v956
    %v1194 = vunpack.c.l.b16 %v957
    %v1195 = vunpack.c.l.b16 %v958
    %v1196 = vunpack.c.h.b16 %v958
    %v1197 = vunpack.c.l.b16 %v959
    %v1198 = vunpack.c.l.b16 %v960
    %v1199 = vunpack.c.h.b16 %v960
    %v1200 = vunpack.c.l.b16 %v961
    %v1201 = vunpack.c.l.b16 %v962
    %v1202 = vunpack.c.h.b16 %v962
    %v1203 = vunpack.c.l.b16 %v963
    %v1204 = vunpack.c.l.b16 %v964
    %v1205 = vunpack.c.h.b16 %v964
    %v1206 = vunpack.c.l.b16 %v965
    %v1207 = vunpack.c.l.b16 %v966
    %v1208 = vunpack.c.h.b16 %v966
    %v1209 = vunpack.c.l.b16 %v967
    %v1210 = vunpack.c.l.b16 %v968
    %v1211 = vunpack.c.h.b16 %v968
    %v1212 = vunpack.c.l.b16 %v969
    %v1213 = vunpack.c.l.b16 %v970
    %v1214 = vunpack.c.h.b16 %v970
    %v1215 = vunpack.c.l.b16 %v971
    %v1216 = vunpack.c.l.b16 %v972
    %v1217 = vunpack.c.h.b16 %v972
    %v1218 = vunpack.c.l.b16 %v973
    %v1219 = vunpack.c.l.b16 %v974
    %v1220 = vunpack.c.h.b16 %v974
    %v1221 = vunpack.c.l.b16 %v975
    %v1222 = vunpack.c.l.b16 %v976
    %v1223 = vunpack.c.h.b16 %v976
    %v1224 = vunpack.c.l.b16 %v977
    %v1225 = vunpack.c.l.b16 %v978
    %v1226 = vunpack.c.h.b16 %v978
    %v1227 = vunpack.c.l.b16 %v979
    %v1228 = vunpack.c.l.b16 %v980
    %v1229 = vunpack.c.h.b16 %v980
    %v1230 = vunpack.c.l.b16 %v981
    %v1231 = vunpack.c.l.b16 %v982
    %v1232 = vunpack.c.h.b16 %v982
    %v1233 = vunpack.c.l.b16 %v983
    %v1234 = vunpack.c.l.b16 %v984
    %v1235 = vunpack.c.h.b16 %v984
    %v1236 = vunpack.c.l.b16 %v985
    %v1237 = vunpack.c.l.b16 %v986
    %v1238 = vunpack.c.h.b16 %v986
    %v1239 = vunpack.c.l.b16 %v987
    %v1240 = vunpack.c.l.b16 %v988
    %v1241 = vunpack.c.h.b16 %v988
    %v1242 = vunpack.c.l.b16 %v989
    %v1243 = vunpack.c.l.b16 %v990
    %v1244 = vunpack.c.h.b16 %v990
    %v1245 = vunpack.c.l.b16 %v991
    %v1246 = vunpack.c.l.b16 %v992
    %v1247 = vunpack.c.h.b16 %v992
    %v1248 = vunpack.c.l.b16 %v993
    %v1249 = vunpack.c.l.b16 %v994
    %v1250 = vunpack.c.h.b16 %v994
    %v1251 = vunpack.c.l.b16 %v995
    %v1252 = vunpack.c.l.b16 %v996
    %v1253 = vunpack.c.h.b16 %v996
    %v1254 = vunpack.c.l.b16 %v997
    %v1255 = vpack.c.b16 %v1114, %v1111
    %v1256 = vpack.c.b16 %v1115, %v1112
    %v1257 = vpack.c.b16 %v1116, %v1113
    %v1258 = vpack.c.b16 %v1120, %v1117
    %v1259 = vpack.c.b16 %v1121, %v1118
    %v1260 = vpack.c.b16 %v1122, %v1119
    %v1261 = vpack.c.b16 %v1126, %v1123
    %v1262 = vpack.c.b16 %v1127, %v1124
    %v1263 = vpack.c.b16 %v1128, %v1125
    %v1264 = vpack.c.b16 %v1132, %v1129
    %v1265 = vpack.c.b16 %v1133, %v1130
    %v1266 = vpack.c.b16 %v1134, %v1131
    %v1267 = vpack.c.b16 %v1138, %v1135
    %v1268 = vpack.c.b16 %v1139, %v1136
    %v1269 = vpack.c.b16 %v1140, %v1137
    %v1270 = vpack.c.b16 %v1144, %v1141
    %v1271 = vpack.c.b16 %v1145, %v1142
    %v1272 = vpack.c.b16 %v1146, %v1143
    %v1273 = vpack.c.b16 %v1150, %v1147
    %v1274 = vpack.c.b16 %v1151, %v1148
    %v1275 = vpack.c.b16 %v1152, %v1149
    %v1276 = vpack.c.b16 %v1156, %v1153
    %v1277 = vpack.c.b16 %v1157, %v1154
    %v1278 = vpack.c.b16 %v1158, %v1155
    %v1279 = vpack.c.b16 %v1162, %v1159
    %v1280 = vpack.c.b16 %v1163, %v1160
    %v1281 = vpack.c.b16 %v1164, %v1161
    %v1282 = vpack.c.b16 %v1168, %v1165
    %v1283 = vpack.c.b16 %v1169, %v1166
    %v1284 = vpack.c.b16 %v1170, %v1167
    %v1285 = vpack.c.b16 %v1174, %v1171
    %v1286 = vpack.c.b16 %v1175, %v1172
    %v1287 = vpack.c.b16 %v1176, %v1173
    %v1288 = vpack.c.b16 %v1180, %v1177
    %v1289 = vpack.c.b16 %v1181, %v1178
    %v1290 = vpack.c.b16 %v1182, %v1179
    %v1291 = vpack.c.b16 %v1186, %v1183
    %v1292 = vpack.c.b16 %v1187, %v1184
    %v1293 = vpack.c.b16 %v1188, %v1185
    %v1294 = vpack.c.b16 %v1192, %v1189
    %v1295 = vpack.c.b16 %v1193, %v1190
    %v1296 = vpack.c.b16 %v1194, %v1191
    %v1297 = vpack.c.b16 %v1198, %v1195
    %v1298 = vpack.c.b16 %v1199, %v1196
    %v1299 = vpack.c.b16 %v1200, %v1197
    %v1300 = vpack.c.b16 %v1204, %v1201
    %v1301 = vpack.c.b16 %v1205, %v1202
    %v1302 = vpack.c.b16 %v1206, %v1203
    %v1303 = vpack.c.b16 %v1210, %v1207
    %v1304 = vpack.c.b16 %v1211, %v1208
    %v1305 = vpack.c.b16 %v1212, %v1209
    %v1306 = vpack.c.b16 %v1216, %v1213
    %v1307 = vpack.c.b16 %v1217, %v1214
    %v1308 = vpack.c.b16 %v1218, %v1215
    %v1309 = vpack.c.b16 %v1222, %v1219
    %v1310 = vpack.c.b16 %v1223, %v1220
    %v1311 = vpack.c.b16 %v1224, %v1221
    %v1312 = vpack.c.b16 %v1228, %v1225
    %v1313 = vpack.c.b16 %v1229, %v1226
    %v1314 = vpack.c.b16 %v1230, %v1227
    %v1315 = vpack.c.b16 %v1234, %v1231
    %v1316 = vpack.c.b16 %v1235, %v1232
    %v1317 = vpack.c.b16 %v1236, %v1233
    %v1318 = vpack.c.b16 %v1240, %v1237
    %v1319 = vpack.c.b16 %v1241, %v1238
    %v1320 = vpack.c.b16 %v1242, %v1239
    %v1321 = vpack.c.b16 %v1246, %v1243
    %v1322 = vpack.c.b16 %v1247, %v1244
    %v1323 = vpack.c.b16 %v1248, %v1245
    %v1324 = vpack.c.b16 %v1252, %v1249
    %v1325 = vpack.c.b16 %v1253, %v1250
    %v1326 = vpack.c.b16 %v1254, %v1251
    %1399 = vmatprep.subr.bf16.mxu0 %v1256
    %1400 = vmatpush1.bf16.msra.mxu0 %v1255
    %1401 = vmatprep.subr.bf16.mxu0 %v1259
    %1402 = vmatpush1.bf16.msra.mxu0 %v1258
    %1403 = vmatprep.subr.bf16.mxu0 %v1262
    %1404 = vmatpush1.bf16.msra.mxu0 %v1261
    %1405 = vmatprep.subr.bf16.mxu0 %v1265
    %1406 = vmatpush1.bf16.msra.mxu0 %v1264
    %1407 = vmatprep.subr.bf16.mxu0 %v1268
    %1408 = vmatpush1.bf16.msra.mxu0 %v1267
    %1409 = vmatprep.subr.bf16.mxu0 %v1271
    %1410 = vmatpush1.bf16.msra.mxu0 %v1270
    %1411 = vmatprep.subr.bf16.mxu0 %v1274
    %1412 = vmatpush1.bf16.msra.mxu0 %v1273
    %1413 = vmatprep.subr.bf16.mxu0 %v1277
    %1414 = vmatpush1.bf16.msra.mxu0 %v1276
    %1415 = vmatprep.subr.bf16.mxu0 %v1280
    %1416 = vmatpush1.bf16.msra.mxu0 %v1279
    %1417 = vmatprep.subr.bf16.mxu0 %v1283
    %1418 = vmatpush1.bf16.msra.mxu0 %v1282
    %1419 = vmatprep.subr.bf16.mxu0 %v1286
    %1420 = vmatpush1.bf16.msra.mxu0 %v1285
    %1421 = vmatprep.subr.bf16.mxu0 %v1289
    %1422 = vmatpush1.bf16.msra.mxu0 %v1288
    %1423 = vmatprep.subr.bf16.mxu0 %v1292
    %1424 = vmatpush1.bf16.msra.mxu0 %v1291
    %1425 = vmatprep.subr.bf16.mxu0 %v1295
    %1426 = vmatpush1.bf16.msra.mxu0 %v1294
    %1427 = vmatprep.subr.bf16.mxu0 %v1298
    %1428 = vmatpush1.bf16.msra.mxu0 %v1297
    %1429 = vmatprep.subr.bf16.mxu0 %v1301
    %1430 = vmatpush1.bf16.msra.mxu0 %v1300
    %1431 = vmatprep.mubr.bf16.mxu0 %v900
    %1432 = vmatmul.mubr.bf16.gmra.mrb[0].mxu0 %v899
    %v1433 = vpop.f32.mrb[0].mxu0
    %v1434 = vadd.f32 %v1003, %v1433
    %v1435 = vpop.f32.mrb[0].mxu0
    %v1436 = vadd.f32 %v1007, %v1435
    %v1437 = vpop.f32.mrb[0].mxu0
    %v1438 = vpop.f32.mrb[0].mxu0
    %1439 = vdwg.mxu0
    %1440 = vmatprep.subr.bf16.mxu0 %v1304
    %1441 = vmatpush1.bf16.msra.mxu0 %v1303
    %1442 = vmatprep.subr.bf16.mxu0 %v1307
    %1443 = vmatpush1.bf16.msra.mxu0 %v1306
    %1444 = vmatprep.subr.bf16.mxu0 %v1310
    %1445 = vmatpush1.bf16.msra.mxu0 %v1309
    %1446 = vmatprep.subr.bf16.mxu0 %v1313
    %1447 = vmatpush1.bf16.msra.mxu0 %v1312
    %1448 = vmatprep.subr.bf16.mxu0 %v1316
    %1449 = vmatpush1.bf16.msra.mxu0 %v1315
    %1450 = vmatprep.subr.bf16.mxu0 %v1319
    %1451 = vmatpush1.bf16.msra.mxu0 %v1318
    %1452 = vmatprep.subr.bf16.mxu0 %v1322
    %1453 = vmatpush1.bf16.msra.mxu0 %v1321
    %1454 = vmatprep.subr.bf16.mxu0 %v1325
    %1455 = vmatpush1.bf16.msra.mxu0 %v1324
    %1456 = vmatprep.subr.bf16.mxu0 0
    %1457 = vmatpush1.bf16.msra.mxu0 0
    %1458 = vmatprep.subr.bf16.mxu0 0
    %1459 = vmatpush1.bf16.msra.mxu0 0
    %1460 = vmatprep.subr.bf16.mxu0 0
    %1461 = vmatpush1.bf16.msra.mxu0 0
    %1462 = vmatprep.subr.bf16.mxu0 0
    %1463 = vmatpush1.bf16.msra.mxu0 0
    %1464 = vmatprep.subr.bf16.mxu0 0
    %1465 = vmatpush1.bf16.msra.mxu0 0
    %1466 = vmatprep.subr.bf16.mxu0 0
    %1467 = vmatpush1.bf16.msra.mxu0 0
    %1468 = vmatprep.subr.bf16.mxu0 0
    %1469 = vmatpush1.bf16.msra.mxu0 0
    %1470 = vmatprep.subr.bf16.mxu0 0
    %1471 = vmatpush1.bf16.msra.mxu0 0
    %1472 = vmatprep.mubr.bf16.mxu0 0
    %1473 = vmatmul.mubr.bf16.gmra.mrb[0].mxu0 %v901
    %v1474 = vpop.f32.mrb[0].mxu0
    %v1475 = vadd.f32 %v1434, %v1474
    %v1476 = vpop.f32.mrb[0].mxu0
    %v1477 = vadd.f32 %v1436, %v1476
    %v1478 = vpop.f32.mrb[0].mxu0
    %v1479 = vpop.f32.mrb[0].mxu0
    %1480 = vdwg.mxu0
    %1481 = vmatprep.subr.bf16.mxu0 0
    %1482 = vmatpush1.bf16.msra.mxu0 %v1257
    %1483 = vmatprep.subr.bf16.mxu0 0
    %1484 = vmatpush1.bf16.msra.mxu0 %v1260
    %1485 = vmatprep.subr.bf16.mxu0 0
    %1486 = vmatpush1.bf16.msra.mxu0 %v1263
    %1487 = vmatprep.subr.bf16.mxu0 0
    %1488 = vmatpush1.bf16.msra.mxu0 %v1266
    %1489 = vmatprep.subr.bf16.mxu0 0
    %1490 = vmatpush1.bf16.msra.mxu0 %v1269
    %1491 = vmatprep.subr.bf16.mxu0 0
    %1492 = vmatpush1.bf16.msra.mxu0 %v1272
    %1493 = vmatprep.subr.bf16.mxu0 0
    %1494 = vmatpush1.bf16.msra.mxu0 %v1275
    %1495 = vmatprep.subr.bf16.mxu0 0
    %1496 = vmatpush1.bf16.msra.mxu0 %v1278
    %1497 = vmatprep.subr.bf16.mxu0 0
    %1498 = vmatpush1.bf16.msra.mxu0 %v1281
    %1499 = vmatprep.subr.bf16.mxu0 0
    %1500 = vmatpush1.bf16.msra.mxu0 %v1284
    %1501 = vmatprep.subr.bf16.mxu0 0
    %1502 = vmatpush1.bf16.msra.mxu0 %v1287
    %1503 = vmatprep.subr.bf16.mxu0 0
    %1504 = vmatpush1.bf16.msra.mxu0 %v1290
    %1505 = vmatprep.subr.bf16.mxu0 0
    %1506 = vmatpush1.bf16.msra.mxu0 %v1293
    %1507 = vmatprep.subr.bf16.mxu0 0
    %1508 = vmatpush1.bf16.msra.mxu0 %v1296
    %1509 = vmatprep.subr.bf16.mxu0 0
    %1510 = vmatpush1.bf16.msra.mxu0 %v1299
    %1511 = vmatprep.subr.bf16.mxu0 0
    %1512 = vmatpush1.bf16.msra.mxu0 %v1302
    %1513 = vmatprep.mubr.bf16.mxu0 %v900
    %1514 = vmatmul.mubr.bf16.gmra.mrb[0].mxu0 %v899
    %v1515 = vpop.f32.mrb[0].mxu0
    %v1516 = vadd.f32 %v1011, %v1515
    %v1517 = vpop.f32.mrb[0].mxu0
    %v1518 = vpop.f32.mrb[0].mxu0
    %v1519 = vpop.f32.mrb[0].mxu0
    %1520 = vdwg.mxu0
    %1521 = vmatprep.subr.bf16.mxu0 0
    %1522 = vmatpush1.bf16.msra.mxu0 %v1305
    %1523 = vmatprep.subr.bf16.mxu0 0
    %1524 = vmatpush1.bf16.msra.mxu0 %v1308
    %1525 = vmatprep.subr.bf16.mxu0 0
    %1526 = vmatpush1.bf16.msra.mxu0 %v1311
    %1527 = vmatprep.subr.bf16.mxu0 0
    %1528 = vmatpush1.bf16.msra.mxu0 %v1314
    %1529 = vmatprep.subr.bf16.mxu0 0
    %1530 = vmatpush1.bf16.msra.mxu0 %v1317
    %1531 = vmatprep.subr.bf16.mxu0 0
    %1532 = vmatpush1.bf16.msra.mxu0 %v1320
    %1533 = vmatprep.subr.bf16.mxu0 0
    %1534 = vmatpush1.bf16.msra.mxu0 %v1323
    %1535 = vmatprep.subr.bf16.mxu0 0
    %1536 = vmatpush1.bf16.msra.mxu0 %v1326
    %1537 = vmatprep.subr.bf16.mxu0 0
    %1538 = vmatpush1.bf16.msra.mxu0 0
    %1539 = vmatprep.subr.bf16.mxu0 0
    %1540 = vmatpush1.bf16.msra.mxu0 0
    %1541 = vmatprep.subr.bf16.mxu0 0
    %1542 = vmatpush1.bf16.msra.mxu0 0
    %1543 = vmatprep.subr.bf16.mxu0 0
    %1544 = vmatpush1.bf16.msra.mxu0 0
    %1545 = vmatprep.subr.bf16.mxu0 0
    %1546 = vmatpush1.bf16.msra.mxu0 0
    %1547 = vmatprep.subr.bf16.mxu0 0
    %1548 = vmatpush1.bf16.msra.mxu0 0
    %1549 = vmatprep.subr.bf16.mxu0 0
    %1550 = vmatpush1.bf16.msra.mxu0 0
    %1551 = vmatprep.subr.bf16.mxu0 0
    %1552 = vmatpush1.bf16.msra.mxu0 0
    %1553 = vmatprep.mubr.bf16.mxu0 0
    %1554 = vmatmul.mubr.bf16.gmra.mrb[0].mxu0 %v901
    %v1555 = vpop.f32.mrb[0].mxu0
    %v1556 = vadd.f32 %v1516, %v1555
    %v1557 = vpop.f32.mrb[0].mxu0
    %v1558 = vpop.f32.mrb[0].mxu0
    %v1559 = vpop.f32.mrb[0].mxu0
    %1560 = vdwg.mxu0
    %1561 = vst [vmem:[#allocation10] sm:$0xff] %v1475
    %1562 = vst [vmem:[#allocation10 + $0x8] sm:$0xff] %v1477
    %1563 = vst [vmem:[#allocation10 + $0x10] sm:$0xff] %v1556
    // Predicated region
    $region46: #{tpu_custom_call.1} parent=1 // pred_check
      _
    $region47: #{tpu_custom_call.1} parent=1 // pred_check_branch
      %1565 = sbr.rel (0) target = $region49
    $region48: #{tpu_custom_call.1} parent=1 // pred_region
      %s1567 = ssub.s32 384, 384
      %1568 = vsyncadd [#allocation4], %s1567
      %s1570 = sshll.u32 [#allocation10], 4
      %s1571 = int_to_ptr.vmem [resolvable:$true] %s1570
      %1573 = dma.vmem_to_hbm [thread:$0]  %s1571, 384, %s7, [#allocation4]
    $region49: #{tpu_custom_call.1} parent=1 // pred_fallthru
      _
    // Predicated region
    $region50: #{tpu_custom_call.1} parent=1 // pred_check
      _
    $region51: #{tpu_custom_call.1} parent=1 // pred_check_branch
      %1575 = sbr.rel (0) target = $region53
    $region52: #{tpu_custom_call.1} parent=1 // pred_region
      %1576 = dma.done [#allocation4], 384
    $region53: #{tpu_custom_call.1} parent=1 // pred_fallthru
      _
    %1577 = vsyncpa [#allocation3], 1
    %1578 = vsyncpa [#allocation6], 1
    %1579 = vsyncpa [#allocation9], 1
    %1580 = vsyncpa [#allocation4], 1

</llo_original>
